<compile_context>
chip_gen: v5e
topology: v5e:2x2
jax: 0.10.0
libtpu: 0.0.40
codegen_flags: <defaults>
</compile_context>

<pallas_src>
import numpy as np

import jax
import jax.numpy as jnp
from jax.experimental import pallas as pl
from jax.experimental.pallas import tpu as pltpu


def _round_up(x, m):
    return ((x + m - 1) // m) * m


# --------------------------------------------------------------------------- kernels
def _linear_kernel(a_ref, w_ref, o_ref):
    # a:(TM,K) f32, w:(K,N) f32 (pos already folded in via one-hot columns) -> o:(TM,N)
    o_ref[...] = jnp.dot(a_ref[...], w_ref[...],
                         preferred_element_type=jnp.float32).astype(o_ref.dtype)


def _linear_bias_kernel(a_ref, w_ref, b_ref, o_ref):
    # a:(TM,K) f32, w:(K,N) f32, b:(1,N) f32 broadcast bias row -> o:(TM,N)
    acc = jnp.dot(a_ref[...], w_ref[...], preferred_element_type=jnp.float32)
    o_ref[...] = (acc + b_ref[...]).astype(o_ref.dtype)


# ------------------------------------------------------------------- tiling / budgets
def _vmem_budgets():
    """(per-tile VMEM budget, vmem_limit_bytes), picked per TPU generation."""
    conservative = (14 << 20, 40 << 20)   # v7x: 64 MiB VMEM per TensorCore
    generous = (36 << 20, 64 << 20)       # v5e / v6e: 128 MiB VMEM
    try:
        cap = int(pltpu.get_tpu_info().vmem_capacity_bytes)
        if cap >= (96 << 20):
            return generous
    except Exception:
        pass
    return conservative                   # unknown -> assume the smallest (v7x) VMEM


def _choose_m_tile(m_rows, row_bytes, fixed_bytes, tile_budget):
    """Rows of A per grid step. m_rows is a multiple of 8 (pre-padded)."""
    unit = 8                                    # f32 sublane granule
    assert m_rows % unit == 0
    n_units = m_rows // unit
    avail = max(tile_budget - fixed_bytes, row_bytes * unit)
    max_units = max(1, min(n_units, int(avail // (row_bytes * unit))))
    # v7x has 2 TensorCores and the grid axis is "parallel": keep >= 4 grid steps
    # (>= 2 per core so each core still overlaps i+1 prefetch / i-1 writeback).
    if n_units >= 4:
        max_units = max(1, min(max_units, n_units // 4))
    best_any = None
    best_even = None
    for u in range(max_units, 0, -1):
        if n_units % u:
            continue
        if best_any is None:
            best_any = u
        steps = n_units // u
        if steps == 1 or steps % 2 == 0:        # even step count: balanced across 2 TCs
            best_even = u
            break
    u = best_even if best_even is not None else (best_any if best_any is not None else 1)
    return u * unit


def _tiled_linear(a, w, bias_row, out_dtype, tile_budget, vmem_limit):
    """out = a @ w (+ bias_row broadcast over rows), emitted in out_dtype.

    a: (M, K) f32 with M % 8 == 0; w: (K, N) f32 with N a multiple of 128 (lane-dense
    output stores); bias_row: None or (1, N) f32.
    """
    m, k = a.shape
    n = w.shape[1]
    out_itemsize = np.dtype(out_dtype).itemsize
    # True (lane-padded) VMEM bytes per A-row for one grid step: the (tm, K) input block
    # is lane-padded to 128 and double-buffered; the (tm, N) output block is double-buffered.
    row_bytes = 2 * _round_up(k, 128) * a.dtype.itemsize + 2 * n * out_itemsize
    # Resident operands (constant index_map): weight (+ tiny bias row), double-buffered.
    fixed_bytes = 2 * _round_up(k, 8) * n * 4
    if bias_row is not None:
        fixed_bytes += 2 * 8 * n * 4
    tm = _choose_m_tile(m, row_bytes, fixed_bytes, tile_budget)
    grid = (m // tm,)

    in_specs = [
        pl.BlockSpec((tm, k), lambda i: (i, 0)),
        pl.BlockSpec((k, n), lambda i: (0, 0)),      # resident: same block every step
    ]
    operands = [a, w]
    if bias_row is None:
        kernel = _linear_kernel
    else:
        kernel = _linear_bias_kernel
        in_specs.append(pl.BlockSpec((1, n), lambda i: (0, 0)))   # tiny resident pos row
        operands.append(bias_row)

    return pl.pallas_call(
        kernel,
        out_shape=jax.ShapeDtypeStruct((m, n), out_dtype),
        grid_spec=pltpu.PrefetchScalarGridSpec(
            num_scalar_prefetch=0,
            grid=grid,
            in_specs=in_specs,
            out_specs=pl.BlockSpec((tm, n), lambda i: (i, 0)),
        ),
        compiler_params=pltpu.CompilerParams(
            dimension_semantics=("parallel",),
            vmem_limit_bytes=int(vmem_limit),
        ),
    )(*operands)


# ------------------------------------------------------------------------ forward pass
def patch_embedding_forward(x, weight, pos_emb, *, patch_len, stride, padding,
                            out_dtype=jnp.bfloat16):
    """PatchEmbedding forward (eval mode).

    x: [B, n_vars, L] f32
    weight: [patch_len, d_model]   (transposed torch Linear weight, no bias)
    pos_emb: [patch_len, d_model]  (squeezed torch (1, 1, patch_len, d_model) parameter)

    out_dtype defaults to bf16: the kernel is HBM-write-bound, so halving output bytes
    is ~2x wall clock everywhere (accumulation stays f32). Pass jnp.float32 for exact
    torch-dtype parity.
    """
    B, n_vars, L = x.shape
    x = x.astype(jnp.float32)
    weight = weight.astype(jnp.float32)
    if padding and padding > 0:
        x = jnp.pad(x, ((0, 0), (0, 0), (0, padding)))
    L_full = x.shape[2]
    seg_num = L_full // patch_len
    num_windows = (L_full - patch_len) // stride + 1
    d_model = weight.shape[1]
    assert seg_num <= pos_emb.shape[0], (
        "position_embedding has only patch_len rows; seg_num > patch_len would fail to "
        "broadcast in the torch module as well")
    pos = pos_emb[:seg_num].astype(jnp.float32)            # [seg_num, d_model]

    tile_budget, vmem_limit = _vmem_budgets()

    k_bd = seg_num * patch_len
    n_bd = seg_num * d_model
    w_bd_bytes = 2 * _round_up(k_bd, 8) * _round_up(n_bd, 128) * 4
    # Block-diagonal fast path: only for the non-overlapping unfold, only while the
    # seg_num-inflated MXU work stays below the HBM roofline (~240 flops/byte on v5e)
    # and the resident block-diagonal weight leaves room for the streaming tiles.
    use_block_diag = (stride == patch_len and k_bd <= 224
                      and w_bd_bytes <= tile_budget // 2)

    if use_block_diag:
        # One row per (batch, variable) series in its natural contiguous layout: no
        # gather, no narrow lane-padded patches tile. Output columns are packed
        # [seg0 | seg1 | ...], so d_model-padding waste only applies to the total width
        # (none when seg_num*d_model % 128 == 0). pos is a single broadcast row.
        a = x[:, :, :k_bd].reshape(B * n_vars, k_bd)
        w_mat = jnp.kron(jnp.eye(seg_num, dtype=jnp.float32), weight)   # (k_bd, n_bd)
        bias_row = pos.reshape(1, n_bd)
        n_pad = _round_up(n_bd, 128)
        if n_pad != n_bd:
            w_mat = jnp.pad(w_mat, ((0, 0), (0, n_pad - n_bd)))
            bias_row = jnp.pad(bias_row, ((0, 0), (0, n_pad - n_bd)))
        n_keep = n_bd
    else:
        # General path (overlapping windows, or huge seg_num*patch_len): gather windows,
        # fold the per-segment position embedding into the matmul via one-hot segment
        # columns (they ride inside the 128-lane padding of the patches tile -> zero
        # extra VMEM, and no large pos operand).
        win_idx = (jnp.arange(num_windows)[:, None] * stride
                   + jnp.arange(patch_len)[None, :])                 # [num_windows, P]
        patches = x[:, :, win_idx].reshape(-1, patch_len)            # [M, P]
        m_rows = patches.shape[0]
        assert m_rows % seg_num == 0, (
            "unfold windows cannot be regrouped into seg_num patches (the torch "
            ".view(-1, seg_num, patch_len) would fail for this shape as well)")
        onehot = (jnp.arange(m_rows)[:, None] % seg_num
                  == jnp.arange(seg_num)[None, :]).astype(jnp.float32)
        a = jnp.concatenate([patches, onehot], axis=1)               # [M, P + seg_num]
        d_pad = _round_up(d_model, 128)
        w_mat = jnp.concatenate([weight, pos], axis=0)               # [P + seg_num, D]
        if d_pad != d_model:
            w_mat = jnp.pad(w_mat, ((0, 0), (0, d_pad - d_model)))
        bias_row = None
        n_keep = d_model

    m_rows = a.shape[0]
    m_pad = _round_up(m_rows, 8)
    if m_pad != m_rows:
        a = jnp.pad(a, ((0, m_pad - m_rows), (0, 0)))

    out2d = _tiled_linear(a, w_mat, bias_row, out_dtype, tile_budget, vmem_limit)
    if m_pad != m_rows or out2d.shape[1] != n_keep:
        # TODO(synk): in production keep seg_num*d_model (or d_model) a multiple of 128
        # so this post-slice pass over the write-bound output never runs.
        out2d = out2d[:m_rows, :n_keep]

    out = out2d.reshape(-1, seg_num, d_model)
    # torch broadcasting of the 3-D activation with the 4-D parameter yields a 4-D tensor.
    out = out[None]
    # TODO(synk): dropout is identity in eval mode; train-mode dropout not implemented.
    return out, n_vars


# ------------------------------------------------------------------------------ tests
if __name__ == "__main__":
    key = jax.random.PRNGKey(0)
    kx, kw, kp = jax.random.split(key, 3)

    B, n_vars, L = 2, 4, 16
    d_model, patch_len = 32, 8

    x = jax.random.normal(kx, (B, n_vars, L), dtype=jnp.float32)
    bound = 1.0 / (patch_len ** 0.5)
    weight = jax.random.uniform(kw, (patch_len, d_model), minval=-bound, maxval=bound,
                                dtype=jnp.float32)
    # Module inits position_embedding to zeros; use small nonzero deterministic values
    # so the add path is actually exercised.
    pos_emb = 0.01 * jax.random.normal(kp, (patch_len, d_model), dtype=jnp.float32)

    def reference(x, weight, pos_emb, patch_len, stride, padding):
        xp = jnp.pad(x, ((0, 0), (0, 0), (0, padding))) if padding else x
        L_full = xp.shape[2]
        seg_num = L_full // patch_len
        num_windows = (L_full - patch_len) // stride + 1
        idx = jnp.arange(num_windows)[:, None] * stride + jnp.arange(patch_len)[None, :]
        pat = xp[:, :, idx].reshape(-1, seg_num, patch_len)
        return (pat @ weight + pos_emb[:seg_num][None])[None]

    # ---- Test 1: non-overlapping stride (block-diagonal fast path) ----
    stride1, padding1 = 8, 8                     # L_full = 24, seg_num = 3
    out1, nv1 = patch_embedding_forward(x, weight, pos_emb, patch_len=patch_len,
                                        stride=stride1, padding=padding1)
    out1 = jax.block_until_ready(out1)
    ref1 = reference(x, weight, pos_emb, patch_len, stride1, padding1)
    assert nv1 == n_vars
    assert out1.dtype == jnp.bfloat16
    assert out1.shape == ref1.shape == (1, B * n_vars, 3, d_model), (out1.shape, ref1.shape)
    assert jnp.allclose(out1.astype(jnp.float32), ref1, atol=3e-2, rtol=3e-2), (
        float(jnp.max(jnp.abs(out1.astype(jnp.float32) - ref1))))

    # ---- Test 2: overlapping stride (one-hot pos fold path) ----
    stride2, padding2 = 4, 0                     # L_full = 16, seg_num = 2, windows = 3
    out2, nv2 = patch_embedding_forward(x, weight, pos_emb, patch_len=patch_len,
                                        stride=stride2, padding=padding2)
    out2 = jax.block_until_ready(out2)
    ref2 = reference(x, weight, pos_emb, patch_len, stride2, padding2)
    assert nv2 == n_vars
    assert out2.shape == ref2.shape == (1, 12, 2, d_model), (out2.shape, ref2.shape)
    assert jnp.allclose(out2.astype(jnp.float32), ref2, atol=3e-2, rtol=3e-2), (
        float(jnp.max(jnp.abs(out2.astype(jnp.float32) - ref2))))

    print("KERNEL_OK")
</pallas_src>

<mosaic_0001>
module attributes {stable_mosaic.version = 11 : i64} {
  func.func @_linear_bias_kernel(%arg0: i32, %arg1: memref<8x24xf32, #tpu.memory_space<vmem>>, %arg2: memref<24x128xf32, #tpu.memory_space<vmem>>, %arg3: memref<1x128xf32, #tpu.memory_space<vmem>>, %arg4: memref<8x128xbf16, #tpu.memory_space<vmem>>) attributes {dimension_semantics = [#tpu.dimension_semantics<parallel>], iteration_bounds = array<i64: 1>, scalar_prefetch = 0 : i64, scratch_operands = 0 : i64, tpu.core_type = #tpu.core_type<tc>, window_params = [{transform_indices = @transform_0, window_bounds = array<i64: 8, 24>}, {pipeline_mode = #tpu.pipeline_mode<synchronous>, transform_indices = @transform_1, window_bounds = array<i64: 24, 128>}, {pipeline_mode = #tpu.pipeline_mode<synchronous>, transform_indices = @transform_2, window_bounds = array<i64: 1, 128>}, {transform_indices = @transform_3, window_bounds = array<i64: 8, 128>}]} {
    %c0 = arith.constant 0 : index
    %c0_0 = arith.constant 0 : index
    %0 = vector.load %arg1[%c0, %c0_0] : memref<8x24xf32, #tpu.memory_space<vmem>>, vector<8x24xf32>
    %c0_1 = arith.constant 0 : index
    %c0_2 = arith.constant 0 : index
    %1 = vector.load %arg2[%c0_1, %c0_2] : memref<24x128xf32, #tpu.memory_space<vmem>>, vector<24x128xf32>
    %cst = arith.constant dense<0.000000e+00> : vector<8x128xf32>
    %2 = tpu.matmul %0, %1, %cst {dimension_numbers = #tpu.dot_dimension_numbers<[1], [0], [0], [1], [0, 0, 1, 1], [], []>} : vector<8x24xf32>, vector<24x128xf32>, vector<8x128xf32> -> vector<8x128xf32>
    %c0_3 = arith.constant 0 : index
    %c0_4 = arith.constant 0 : index
    %3 = vector.load %arg3[%c0_3, %c0_4] : memref<1x128xf32, #tpu.memory_space<vmem>>, vector<1x128xf32>
    %4 = vector.broadcast %3 : vector<1x128xf32> to vector<8x128xf32>
    %5 = arith.addf %2, %4 : vector<8x128xf32>
    %6 = arith.truncf %5 : vector<8x128xf32> to vector<8x128xbf16>
    %c0_5 = arith.constant 0 : index
    %c0_6 = arith.constant 0 : index
    %7 = vector.load %arg4[%c0_5, %c0_6] : memref<8x128xbf16, #tpu.memory_space<vmem>>, vector<8x128xbf16>
    tpu.vector_store %arg4[%c0_5, %c0_6], %6 {strides = array<i32>} : memref<8x128xbf16, #tpu.memory_space<vmem>>, vector<8x128xbf16>,
    return
  }
  func.func @transform_0(%arg0: i32) -> (i32, i32) {
    %c0_i32 = arith.constant 0 : i32
    %c0_i32_0 = arith.constant 0 : i32
    return %arg0, %c0_i32 : i32, i32
  }
  func.func @transform_1(%arg0: i32) -> (i32, i32) {
    %c0_i32 = arith.constant 0 : i32
    %c0_i32_0 = arith.constant 0 : i32
    %c0_i32_1 = arith.constant 0 : i32
    return %c0_i32, %c0_i32_0 : i32, i32
  }
  func.func @transform_2(%arg0: i32) -> (i32, i32) {
    %c0_i32 = arith.constant 0 : i32
    %c0_i32_0 = arith.constant 0 : i32
    %c0_i32_1 = arith.constant 0 : i32
    return %c0_i32, %c0_i32_0 : i32, i32
  }
  func.func @transform_3(%arg0: i32) -> (i32, i32) {
    %c0_i32 = arith.constant 0 : i32
    %c0_i32_0 = arith.constant 0 : i32
    return %arg0, %c0_i32 : i32, i32
  }
}

</mosaic_0001>

<llo_original>
// kernel: tpu_custom_call.1
$region0: #{tpu_custom_call.1}
  #allocation0 [shape = 'u32[]', space=smem, size = 0x4, offset = 0x4, fixed_abs, tag = 'smem constant byte address 0x4 - core index']
  #allocation1 [shape = 'u32[72,128]{1,0:T(1,128)}', space=vmem, size = 0x9000, scoped, tag = 'internal scratch']
  %s0 = inlined_call_operand.hbm [shape: f32[8,24], index: 0, kind: input, shape index: {}]
  %s1 = inlined_call_operand.hbm [shape: f32[24,128], index: 1, kind: input, shape index: {}]
  %s2 = inlined_call_operand.vmem [shape: f32[1,128], index: 2, kind: input, shape index: {}]
  %s3 = inlined_call_operand.hbm [shape: bf16[8,128], index: 3, kind: output, shape index: {}]
  %s4 = sld [smem:[#allocation0]]
  $region30: #{tpu_custom_call.1} parent=0
    _
  %s6 = ssub.s32 1, %s4
  %s7 = scalar_select 0, %s6, %s4
  $region1: #{tpu_custom_call.1} parent=0
    #allocation2 [shape = 'u8[4096]{0}', space=vmem, size = 0x1000, scoped, tag = 'input window, operand 0, single buffered']
    #allocation3 [shape = 's32[1]{0}', space=sflag, size = 0x4, scoped, tag = 'scoped memory for tpu_custom_call.1']
    #allocation4 [shape = 's32[1]{0}', space=sflag, size = 0x4, scoped, tag = 'scoped memory for tpu_custom_call.1']
    #allocation5 [shape = 'u8[12288]{0}', space=vmem, size = 0x3000, scoped, tag = 'input window, operand 1, single buffered']
    #allocation6 [shape = 's32[1]{0}', space=sflag, size = 0x4, scoped, tag = 'scoped memory for tpu_custom_call.1']
    #allocation7 [shape = 'u8[2048]{0}', space=vmem, size = 0x800, scoped, tag = 'output window, operand 0, single buffered']
    %8 = vsyncpa [#allocation3], 0
    %9 = vsyncpa [#allocation6], 0
    %10 = vsyncpa [#allocation4], 0
    // Predicated region
    $region2: #{tpu_custom_call.1} parent=1 // pred_check
      _
    $region3: #{tpu_custom_call.1} parent=1 // pred_check_branch
      %12 = sbr.rel (0) target = $region5
    $region4: #{tpu_custom_call.1} parent=1 // pred_region
      %14 = vsyncadd [#allocation3], 0
      %s16 = sshll.u32 %s0, 4
      %s17 = int_to_ptr.hbm [resolvable:$true] %s16
      %s18 = sshll.u32 [#allocation2], 4
      %s19 = int_to_ptr.vmem [resolvable:$true] %s18
      %21 = dma.hbm_to_vmem [thread:$0]  %s17, 128, %s19, [#allocation3]
    $region5: #{tpu_custom_call.1} parent=1 // pred_fallthru
      _
    // Predicated region
    $region6: #{tpu_custom_call.1} parent=1 // pred_check
      _
    $region7: #{tpu_custom_call.1} parent=1 // pred_check_branch
      %23 = sbr.rel (0) target = $region9
    $region8: #{tpu_custom_call.1} parent=1 // pred_region
      %25 = vsyncadd [#allocation6], 0
      %s26 = sshll.u32 %s1, 4
      %s27 = int_to_ptr.hbm [resolvable:$true] %s26
      %s28 = sshll.u32 [#allocation5], 4
      %s29 = int_to_ptr.vmem [resolvable:$true] %s28
      %34 = dma.hbm_to_vmem [thread:$0]  %s27, 384, %s29, [#allocation6], 128, 128, 8
    $region9: #{tpu_custom_call.1} parent=1 // pred_fallthru
      _
    // Predicated region
    $region10: #{tpu_custom_call.1} parent=1 // pred_check
      _
    $region11: #{tpu_custom_call.1} parent=1 // pred_check_branch
      %36 = sbr.rel (0) target = $region13
    $region12: #{tpu_custom_call.1} parent=1 // pred_region
      _
    $region13: #{tpu_custom_call.1} parent=1 // pred_fallthru
      _
    // Predicated region
    $region14: #{tpu_custom_call.1} parent=1 // pred_check
      _
    $region15: #{tpu_custom_call.1} parent=1 // pred_check_branch
      %38 = sbr.rel (0) target = $region17
    $region16: #{tpu_custom_call.1} parent=1 // pred_region
      %40 = dma.done [#allocation3], 128
    $region17: #{tpu_custom_call.1} parent=1 // pred_fallthru
      _
    // Predicated region
    $region18: #{tpu_custom_call.1} parent=1 // pred_check
      _
    $region19: #{tpu_custom_call.1} parent=1 // pred_check_branch
      %42 = sbr.rel (0) target = $region21
    $region20: #{tpu_custom_call.1} parent=1 // pred_region
      %44 = dma.done [#allocation6], 384
    $region21: #{tpu_custom_call.1} parent=1 // pred_fallthru
      _
    %v45 = vld [vmem:[#allocation2] sm:$0xff]
    %v46 = vld [vmem:[#allocation5] sm:$0xff]
    %v47 = vld [vmem:[#allocation5 + $0x8] sm:$0xff]
    %v48 = vld [vmem:[#allocation5 + $0x10] sm:$0xff]
    %v49 = vld [vmem:[%s2] sm:$0x1]
    %v51 = vperm.slane %v49, 0
    %vm53 = vcmask 195584
    %v55 = vsel %vm53, %v45, 0
    %57 = vmatpush.msra.mxu0 0.0
    %58 = vmatpush.msra.mxu0 0.0
    %59 = vmatpush.msra.mxu0 0.0
    %60 = vmatpush.msra.mxu0 0.0
    %61 = vmatpush.msra.mxu0 0.0
    %62 = vmatpush.msra.mxu0 0.0
    %63 = vmatpush.msra.mxu0 0.0
    %64 = vmatpush.msra.mxu0 0.0
    %65 = vmatpush.msra.mxu0 0.0
    %66 = vmatpush.msra.mxu0 0.0
    %67 = vmatpush.msra.mxu0 0.0
    %68 = vmatpush.msra.mxu0 0.0
    %69 = vmatpush.msra.mxu0 0.0
    %70 = vmatpush.msra.mxu0 %v48
    %71 = vmatpush.msra.mxu0 %v47
    %72 = vmatpush.msra.mxu0 %v46
    %73 = vmatmul.f32.gmra.mxu0 %v55
    %v74 = vpop.f32.mrf.mxu0
    %v75 = vadd.f32 %v51, %v74
    %76 = vdwg.mxu0
    %v77 = vpack.c.bf16 %v75, %v75
    %78 = vst [vmem:[#allocation7] sm:$0xf] %v77
    // Predicated region
    $region22: #{tpu_custom_call.1} parent=1 // pred_check
      _
    $region23: #{tpu_custom_call.1} parent=1 // pred_check_branch
      %80 = sbr.rel (0) target = $region25
    $region24: #{tpu_custom_call.1} parent=1 // pred_region
      %82 = vsyncadd [#allocation4], 0
      %s84 = sshll.u32 [#allocation7], 4
      %s85 = int_to_ptr.vmem [resolvable:$true] %s84
      %s86 = sshll.u32 %s3, 4
      %s87 = int_to_ptr.hbm [resolvable:$true] %s86
      %89 = dma.vmem_to_hbm [thread:$0]  %s85, 64, %s87, [#allocation4]
    $region25: #{tpu_custom_call.1} parent=1 // pred_fallthru
      _
    // Predicated region
    $region26: #{tpu_custom_call.1} parent=1 // pred_check
      _
    $region27: #{tpu_custom_call.1} parent=1 // pred_check_branch
      %91 = sbr.rel (0) target = $region29
    $region28: #{tpu_custom_call.1} parent=1 // pred_region
      %93 = dma.done [#allocation4], 64
    $region29: #{tpu_custom_call.1} parent=1 // pred_fallthru
      _
    %94 = vsyncpa [#allocation3], 1
    %95 = vsyncpa [#allocation6], 1
    %96 = vsyncpa [#allocation4], 1

</llo_original>
